<compile_context>
chip_gen: v5e
topology: v5e:2x2
jax: 0.10.0
libtpu: 0.0.40
codegen_flags: <defaults>
</compile_context>

<pallas_src>
import jax
import jax.numpy as jnp
from jax.experimental import pallas as pl
from jax.experimental.pallas import tpu as pltpu


def _round_up(x, m):
    return ((x + m - 1) // m) * m


# ---------------- Pallas kernel ----------------

def _fused_conv_pool_head_kernel(xr_ref, wrow_ref, bias_ref, pool_ref,
                                 whead_ref, bhead_ref, o_ref):
    # xr_ref   : (TB*H, 3*(W+2)*Cin) bf16  row-slab (3 padded rows per output row)
    # wrow_ref : (3*(W+2)*Cin, W*Cout) bf16  Toeplitz-expanded conv weights
    # bias_ref : (1, W*Cout) f32             conv bias tiled over W
    # pool_ref : (TB, TB*H) bf16             block-diagonal 1/H (mean over rows)
    # whead_ref: (W*Cout, n_pad) f32         (1/W) * tile(w1@w2) collapsed head
    # bhead_ref: (1, n_pad) f32              b1@w2 + b2 (zero-padded)
    # o_ref    : (TB, n_pad) f32             lane-dense padded logits

    # 3x3 conv (pad=1) for all pixels of the TB images: ONE MXU matmul, f32 acc.
    conv = jnp.dot(xr_ref[...], wrow_ref[...],
                   preferred_element_type=jnp.float32)           # (TB*H, W*Cout)
    # bias + ReLU in f32, then down-cast so the pooling matmul is bf16 x bf16.
    act = jnp.maximum(conv + bias_ref[...], 0.0).astype(jnp.bfloat16)

    # Mean over rows h (per image) as an MXU matmul with the resident 1/H matrix.
    pooled = jnp.dot(pool_ref[...], act,
                     preferred_element_type=jnp.float32)         # (TB, W*Cout)

    # Mean over columns w + embedding + projection head, all folded into one
    # small matmul (whead already contains 1/W and w1@w2).
    logits = jnp.dot(pooled, whead_ref[...],
                     preferred_element_type=jnp.float32) + bhead_ref[...]
    o_ref[...] = logits                                          # (TB, n_pad)


# ---------------- jitted forward wrapper ----------------

def _forward(x_nchw, w_conv, b_conv, w1, b1, w2, b2, tb_max=64):
    # layout: NCHW (PyTorch) -> NHWC
    x = jnp.transpose(x_nchw, (0, 2, 3, 1)).astype(jnp.float32)  # (B, H, W, Cin)
    B, H, W, Cin = x.shape
    Cout = w_conv.shape[-1]
    n_classes = w2.shape[-1]
    Wp = W + 2
    WC = Wp * Cin               # fused (padded col, cin) lane dim of one row tap
    K = 3 * WC                  # 3 row taps concatenated -> conv contraction dim
    WCout = W * Cout            # fused (col, cout) lane dim of the conv output

    # --- batch tiling: cdiv grid + zero padding (never a TB=B fallback) ---
    TB = min(tb_max, _round_up(B, 8))
    if B > 8 and _round_up(B, TB) // TB < 2:
        TB = _round_up((B + 1) // 2, 8)      # keep grid >= 2 for v7x megacore
    B_pad = _round_up(B, TB)
    grid = B_pad // TB
    if B_pad != B:
        x = jnp.pad(x, ((0, B_pad - B), (0, 0), (0, 0), (0, 0)))

    # --- row-slab input: for output row h, the 3 padded input rows h..h+2 ---
    xpad = jnp.pad(x, ((0, 0), (1, 1), (1, 1), (0, 0)))          # (B_pad,H+2,W+2,Cin)
    taps = [xpad[:, dy:dy + H].reshape(B_pad, H, WC) for dy in range(3)]
    xrow = jnp.concatenate(taps, axis=-1).reshape(B_pad * H, K)
    xrow = xrow.astype(jnp.bfloat16)                             # dominant HBM stream

    # --- Toeplitz row-conv weights: (K, W*Cout), bf16 ---
    # wrow[dy*WC + p*Cin + ci, w*Cout + co] = w_conv[dy, p - w, ci, co] for 0<=p-w<=2
    pcol = jnp.arange(Wp)[:, None, None]
    dx = jnp.arange(3)[None, :, None]
    ocol = jnp.arange(W)[None, None, :]
    sel = (pcol == ocol + dx).astype(w_conv.dtype)               # (Wp, 3, W)
    wrow = jnp.einsum('pdw,ydcn->ypcwn', sel, w_conv)            # (3,Wp,Cin,W,Cout)
    wrow = wrow.reshape(K, WCout).astype(jnp.bfloat16)

    # conv bias tiled over output columns: index w*Cout+co -> b_conv[co]
    bias_row = jnp.tile(b_conv, (W,)).reshape(1, WCout).astype(jnp.float32)

    # --- block-diagonal mean-over-rows matrix (resident, bf16; 1/H exact) ---
    img = jnp.arange(TB * H) // H
    pool = (jnp.arange(TB)[:, None] == img[None, :]).astype(jnp.float32) / H
    pool = pool.astype(jnp.bfloat16)                             # (TB, TB*H)

    # --- collapsed linear head (exact: linear-after-linear), lane-padded ---
    # TODO(synk): if the real TaskDiscoveryEncoder applies BN/ReLU to the
    # embedding, the head cannot be collapsed like this.
    n_pad = _round_up(max(n_classes, 128), 128)
    w12 = jnp.pad(w1 @ w2, ((0, 0), (0, n_pad - n_classes)))     # (Cout, n_pad)
    b12 = jnp.pad(b1 @ w2 + b2, ((0, n_pad - n_classes),))       # (n_pad,)
    whead = (jnp.tile(w12, (W, 1)) / W).astype(jnp.float32)      # (W*Cout, n_pad)
    bhead = b12.reshape(1, n_pad).astype(jnp.float32)

    logits = pl.pallas_call(
        _fused_conv_pool_head_kernel,
        out_shape=jax.ShapeDtypeStruct((B_pad, n_pad), jnp.float32),
        grid=(grid,),
        in_specs=[
            pl.BlockSpec((TB * H, K), lambda b: (b, 0)),         # per-tile row slab
            pl.BlockSpec((K, WCout), lambda b: (0, 0)),          # conv weights (resident)
            pl.BlockSpec((1, WCout), lambda b: (0, 0)),
            pl.BlockSpec((TB, TB * H), lambda b: (0, 0)),        # pool matrix (resident)
            pl.BlockSpec((WCout, n_pad), lambda b: (0, 0)),      # collapsed head
            pl.BlockSpec((1, n_pad), lambda b: (0, 0)),
        ],
        out_specs=pl.BlockSpec((TB, n_pad), lambda b: (b, 0)),   # lane-dense logits
        compiler_params=pltpu.CompilerParams(
            dimension_semantics=("parallel",),
            vmem_limit_bytes=32 * 1024 * 1024),
    )(xrow, wrow, bias_row, pool, whead, bhead)

    return logits[:B, :n_classes]


class CIFAREmbeddingClassificationTaskPallas:
    """Pallas port: forward(x_nchw) -> logits (B, n_classes), out_type='logits'."""

    def __init__(self, h_dim=32, in_dim=(3,), n_classes=2, conv_ch=16, seed=0):
        self.h_dim = h_dim
        self.cin = in_dim[0]
        self.n_classes = n_classes
        self.conv_ch = conv_ch

        k = jax.random.PRNGKey(seed)
        k1, k2, k3, k4, k5, k6 = jax.random.split(k, 6)
        # conv stem: 3x3, pad=1, stride=1
        self.w_conv = 0.1 * jax.random.normal(k1, (3, 3, self.cin, conv_ch), jnp.float32)
        self.b_conv = 0.1 * jax.random.normal(k2, (conv_ch,), jnp.float32)
        # backbone fc: conv_ch -> h_dim (the "embedding")
        self.w1 = 0.1 * jax.random.normal(k3, (conv_ch, h_dim), jnp.float32)
        self.b1 = 0.1 * jax.random.normal(k4, (h_dim,), jnp.float32)
        # linear projection head: h_dim -> n_classes (proj='linear')
        self.w2 = 0.1 * jax.random.normal(k5, (h_dim, n_classes), jnp.float32)
        self.b2 = 0.1 * jax.random.normal(k6, (n_classes,), jnp.float32)

        self._forward = jax.jit(_forward)

    def __call__(self, x_nchw):
        return self._forward(x_nchw, self.w_conv, self.b_conv,
                             self.w1, self.b1, self.w2, self.b2)


# ---------------- pure-JAX reference (for a loose self-check) ----------------

def _reference_forward(x_nchw, t):
    x = jnp.transpose(x_nchw, (0, 2, 3, 1)).astype(jnp.float32)
    conv = jax.lax.conv_general_dilated(
        x, t.w_conv, window_strides=(1, 1), padding='SAME',
        dimension_numbers=('NHWC', 'HWIO', 'NHWC'))
    act = jnp.maximum(conv + t.b_conv, 0.0)
    feat = act.mean(axis=(1, 2))
    emb = feat @ t.w1 + t.b1
    return emb @ t.w2 + t.b2


if __name__ == "__main__":
    key = jax.random.PRNGKey(0)
    # small shapes consistent with the module: batch=2, in_dim=(3,), spatial=16
    x = jax.random.normal(key, (2, 3, 16, 16), dtype=jnp.float32)

    task = CIFAREmbeddingClassificationTaskPallas(h_dim=32, in_dim=(3,), n_classes=2)
    logits = jax.block_until_ready(task(x))
    assert logits.shape == (2, 2) and logits.dtype == jnp.float32

    # loose numerical check against a pure-JAX fp32 reference (bf16 streams in
    # the kernel mean it will not bit-match, but it must be close).
    ref = jax.block_until_ready(_reference_forward(x, task))
    err = float(jnp.max(jnp.abs(logits - ref)))
    assert err < 5e-2, f"max abs error vs reference: {err}"

    print("KERNEL_OK")
</pallas_src>

<mosaic_0001>
module attributes {stable_mosaic.version = 11 : i64} {
  func.func @_fused_conv_pool_head_kernel(%arg0: i32, %arg1: memref<128x162xbf16, #tpu.memory_space<vmem>>, %arg2: memref<162x256xbf16, #tpu.memory_space<vmem>>, %arg3: memref<1x256xf32, #tpu.memory_space<vmem>>, %arg4: memref<8x128xbf16, #tpu.memory_space<vmem>>, %arg5: memref<256x128xf32, #tpu.memory_space<vmem>>, %arg6: memref<1x128xf32, #tpu.memory_space<vmem>>, %arg7: memref<8x128xf32, #tpu.memory_space<vmem>>) attributes {dimension_semantics = [#tpu.dimension_semantics<parallel>], iteration_bounds = array<i64: 1>, scalar_prefetch = 0 : i64, scratch_operands = 0 : i64, tpu.core_type = #tpu.core_type<tc>, window_params = [{transform_indices = @transform_0, window_bounds = array<i64: 128, 162>}, {pipeline_mode = #tpu.pipeline_mode<synchronous>, transform_indices = @transform_1, window_bounds = array<i64: 162, 256>}, {pipeline_mode = #tpu.pipeline_mode<synchronous>, transform_indices = @transform_2, window_bounds = array<i64: 1, 256>}, {pipeline_mode = #tpu.pipeline_mode<synchronous>, transform_indices = @transform_3, window_bounds = array<i64: 8, 128>}, {pipeline_mode = #tpu.pipeline_mode<synchronous>, transform_indices = @transform_4, window_bounds = array<i64: 256, 128>}, {pipeline_mode = #tpu.pipeline_mode<synchronous>, transform_indices = @transform_5, window_bounds = array<i64: 1, 128>}, {transform_indices = @transform_6, window_bounds = array<i64: 8, 128>}]} {
    %c0 = arith.constant 0 : index
    %c0_0 = arith.constant 0 : index
    %0 = vector.load %arg1[%c0, %c0_0] : memref<128x162xbf16, #tpu.memory_space<vmem>>, vector<128x162xbf16>
    %c0_1 = arith.constant 0 : index
    %c0_2 = arith.constant 0 : index
    %1 = vector.load %arg2[%c0_1, %c0_2] : memref<162x256xbf16, #tpu.memory_space<vmem>>, vector<162x256xbf16>
    %cst = arith.constant dense<0.000000e+00> : vector<128x256xf32>
    %2 = tpu.matmul %0, %1, %cst {dimension_numbers = #tpu.dot_dimension_numbers<[1], [0], [0], [1], [0, 0, 1, 1], [], []>} : vector<128x162xbf16>, vector<162x256xbf16>, vector<128x256xf32> -> vector<128x256xf32>
    %c0_3 = arith.constant 0 : index
    %c0_4 = arith.constant 0 : index
    %3 = vector.load %arg3[%c0_3, %c0_4] : memref<1x256xf32, #tpu.memory_space<vmem>>, vector<1x256xf32>
    %4 = vector.broadcast %3 : vector<1x256xf32> to vector<128x256xf32>
    %5 = arith.addf %2, %4 : vector<128x256xf32>
    %cst_5 = arith.constant 0.000000e+00 : f32
    %6 = vector.broadcast %cst_5 : f32 to vector<128x256xf32>
    %7 = arith.maximumf %5, %6 : vector<128x256xf32>
    %8 = arith.truncf %7 : vector<128x256xf32> to vector<128x256xbf16>
    %c0_6 = arith.constant 0 : index
    %c0_7 = arith.constant 0 : index
    %9 = vector.load %arg4[%c0_6, %c0_7] : memref<8x128xbf16, #tpu.memory_space<vmem>>, vector<8x128xbf16>
    %cst_8 = arith.constant dense<0.000000e+00> : vector<8x256xf32>
    %10 = tpu.matmul %9, %8, %cst_8 {dimension_numbers = #tpu.dot_dimension_numbers<[1], [0], [0], [1], [0, 0, 1, 1], [], []>} : vector<8x128xbf16>, vector<128x256xbf16>, vector<8x256xf32> -> vector<8x256xf32>
    %c0_9 = arith.constant 0 : index
    %c0_10 = arith.constant 0 : index
    %11 = vector.load %arg5[%c0_9, %c0_10] : memref<256x128xf32, #tpu.memory_space<vmem>>, vector<256x128xf32>
    %cst_11 = arith.constant dense<0.000000e+00> : vector<8x128xf32>
    %12 = tpu.matmul %10, %11, %cst_11 {dimension_numbers = #tpu.dot_dimension_numbers<[1], [0], [0], [1], [0, 0, 1, 1], [], []>} : vector<8x256xf32>, vector<256x128xf32>, vector<8x128xf32> -> vector<8x128xf32>
    %c0_12 = arith.constant 0 : index
    %c0_13 = arith.constant 0 : index
    %13 = vector.load %arg6[%c0_12, %c0_13] : memref<1x128xf32, #tpu.memory_space<vmem>>, vector<1x128xf32>
    %14 = vector.broadcast %13 : vector<1x128xf32> to vector<8x128xf32>
    %15 = arith.addf %12, %14 : vector<8x128xf32>
    %c0_14 = arith.constant 0 : index
    %c0_15 = arith.constant 0 : index
    %16 = vector.load %arg7[%c0_14, %c0_15] : memref<8x128xf32, #tpu.memory_space<vmem>>, vector<8x128xf32>
    tpu.vector_store %arg7[%c0_14, %c0_15], %15 {strides = array<i32>} : memref<8x128xf32, #tpu.memory_space<vmem>>, vector<8x128xf32>,
    return
  }
  func.func @transform_0(%arg0: i32) -> (i32, i32) {
    %c0_i32 = arith.constant 0 : i32
    %c0_i32_0 = arith.constant 0 : i32
    return %arg0, %c0_i32 : i32, i32
  }
  func.func @transform_1(%arg0: i32) -> (i32, i32) {
    %c0_i32 = arith.constant 0 : i32
    %c0_i32_0 = arith.constant 0 : i32
    %c0_i32_1 = arith.constant 0 : i32
    return %c0_i32, %c0_i32_0 : i32, i32
  }
  func.func @transform_2(%arg0: i32) -> (i32, i32) {
    %c0_i32 = arith.constant 0 : i32
    %c0_i32_0 = arith.constant 0 : i32
    %c0_i32_1 = arith.constant 0 : i32
    return %c0_i32, %c0_i32_0 : i32, i32
  }
  func.func @transform_3(%arg0: i32) -> (i32, i32) {
    %c0_i32 = arith.constant 0 : i32
    %c0_i32_0 = arith.constant 0 : i32
    %c0_i32_1 = arith.constant 0 : i32
    return %c0_i32, %c0_i32_0 : i32, i32
  }
  func.func @transform_4(%arg0: i32) -> (i32, i32) {
    %c0_i32 = arith.constant 0 : i32
    %c0_i32_0 = arith.constant 0 : i32
    %c0_i32_1 = arith.constant 0 : i32
    return %c0_i32, %c0_i32_0 : i32, i32
  }
  func.func @transform_5(%arg0: i32) -> (i32, i32) {
    %c0_i32 = arith.constant 0 : i32
    %c0_i32_0 = arith.constant 0 : i32
    %c0_i32_1 = arith.constant 0 : i32
    return %c0_i32, %c0_i32_0 : i32, i32
  }
  func.func @transform_6(%arg0: i32) -> (i32, i32) {
    %c0_i32 = arith.constant 0 : i32
    %c0_i32_0 = arith.constant 0 : i32
    return %arg0, %c0_i32 : i32, i32
  }
}

</mosaic_0001>

<llo_original>
// kernel: tile.13
$region0: #{tile.13}
  #allocation0 [shape = 's32[1]{0}', space=sflag, size = 0x4, scoped, tag = 'scoped memory for tile.13']
  %s0 = inlined_call_operand.vmem [shape: f32[16], index: 0, kind: input, shape index: {}]
  %s1 = inlined_call_operand.vmem [shape: f32[16,16], index: 1, kind: output, shape index: {}]
  // Predicated region
  $region2: #{tile.13} parent=0 // pred_check
    _
  $region3: #{tile.13} parent=0 // pred_check_branch
    %3 = sbr.rel (0) target = $region5
  $region4: #{tile.13} parent=0 // pred_region
    _
  $region5: #{tile.13} parent=0 // pred_fallthru
    _
  %v4 = vld [vmem:[%s0] ss:$0 sm:$0xff]
  %5 = vst [vmem:[%s1] sm:$0xff] %v4
  %s6 = scalar_lea.vmem %s1, 8
  %7 = vst [vmem:[%s6] sm:$0xff] %v4

// kernel: tile.14
$region0: #{tile.14}
  %s0 = inlined_call_operand.vmem [shape: f32[16,16], index: 0, kind: input, shape index: {}]
  %s1 = inlined_call_operand.vmem [shape: f32[1,256], index: 1, kind: output, shape index: {}]
  $region1: #{tile.14} parent=0
    #allocation0 [shape = 'u8[8192]{0}', space=vmem, size = 0x2000, scoped, tag = 'scoped mem for output reshape']
    %s2 = smov 3
    %v3 = vld [vmem:[%s0] ss:$8 sm:%s2]
    %vm4 = vcmask 130048
    %5 = vst.msk [vmem:[#allocation0] ss:$8 sm:$0x3] %vm4, %v3
    %s6 = scalar_lea.vmem %s0, 7
    %s7 = smov 3
    %v8 = vld [vmem:[%s6] ss:$8 sm:%s7]
    %9 = vrot.lane.b32.xlu0 %v8, 112
    %v10 = vpop.permute.xlu0 %9
    %vm11 = vcmask 1048448
    %12 = vst.msk [vmem:[#allocation0] ss:$8 sm:$0x3] %vm11, %v10
    %s13 = scalar_lea.vmem %s0, 6
    %s14 = smov 3
    %v15 = vld [vmem:[%s13] ss:$8 sm:%s14]
    %16 = vrot.lane.b32.xlu0 %v15, 96
    %v17 = vpop.permute.xlu0 %16
    %vm18 = vcmask 917248
    %19 = vst.msk [vmem:[#allocation0] ss:$8 sm:$0x3] %vm18, %v17
    %s20 = scalar_lea.vmem %s0, 5
    %s21 = smov 3
    %v22 = vld [vmem:[%s20] ss:$8 sm:%s21]
    %23 = vrot.lane.b32.xlu0 %v22, 80
    %v24 = vpop.permute.xlu0 %23
    %vm25 = vcmask 786048
    %26 = vst.msk [vmem:[#allocation0] ss:$8 sm:$0x3] %vm25, %v24
    %s27 = scalar_lea.vmem %s0, 4
    %s28 = smov 3
    %v29 = vld [vmem:[%s27] ss:$8 sm:%s28]
    %30 = vrot.lane.b32.xlu0 %v29, 64
    %v31 = vpop.permute.xlu0 %30
    %vm32 = vcmask 654848
    %33 = vst.msk [vmem:[#allocation0] ss:$8 sm:$0x3] %vm32, %v31
    %s34 = scalar_lea.vmem %s0, 3
    %s35 = smov 3
    %v36 = vld [vmem:[%s34] ss:$8 sm:%s35]
    %37 = vrot.lane.b32.xlu0 %v36, 48
    %v38 = vpop.permute.xlu0 %37
    %vm39 = vcmask 523648
    %40 = vst.msk [vmem:[#allocation0] ss:$8 sm:$0x3] %vm39, %v38
    %s41 = scalar_lea.vmem %s0, 2
    %s42 = smov 3
    %v43 = vld [vmem:[%s41] ss:$8 sm:%s42]
    %44 = vrot.lane.b32.xlu0 %v43, 32
    %v45 = vpop.permute.xlu0 %44
    %vm46 = vcmask 392448
    %47 = vst.msk [vmem:[#allocation0] ss:$8 sm:$0x3] %vm46, %v45
    %s48 = scalar_lea.vmem %s0, 1
    %s49 = smov 3
    %v50 = vld [vmem:[%s48] ss:$8 sm:%s49]
    %51 = vrot.lane.b32.xlu0 %v50, 16
    %v52 = vpop.permute.xlu0 %51
    %vm53 = vcmask 261248
    %54 = vst.msk [vmem:[#allocation0] ss:$8 sm:$0x3] %vm53, %v52
    %s56 = ssub.s32 2, 1
    %v57 = vld [vmem:[#allocation0] sm:%s56]
    %s59 = ssub.s32 2, 1
    %60 = vst [vmem:[%s1] sm:%s59] %v57
    %s61 = scalar_lea.vmem [#allocation0], 8
    %v62 = vld [vmem:[%s61] sm:%s56]
    %s64 = ssub.s32 2, 1
    %s65 = scalar_lea.vmem %s1, 1
    %66 = vst [vmem:[%s65] sm:%s64] %v62

// kernel: _forward.1
$region0: #{_forward.1}
  #allocation0 [shape = 'u32[]', space=smem, size = 0x4, offset = 0x4, fixed_abs, tag = 'smem constant byte address 0x4 - core index']
  #allocation1 [shape = 'u32[72,128]{1,0:T(1,128)}', space=vmem, size = 0x9000, scoped, tag = 'internal scratch']
  %s0 = inlined_call_operand.vmem [shape: bf16[128,162], index: 0, kind: input, shape index: {}]
  %s1 = inlined_call_operand.vmem [shape: bf16[162,256], index: 1, kind: input, shape index: {}]
  %s2 = inlined_call_operand.vmem [shape: f32[1,256], index: 2, kind: input, shape index: {}]
  %s3 = inlined_call_operand.vmem [shape: bf16[8,128], index: 3, kind: input, shape index: {}]
  %s4 = inlined_call_operand.vmem [shape: f32[256,128], index: 4, kind: input, shape index: {}]
  %s5 = inlined_call_operand.vmem [shape: f32[1,128], index: 5, kind: input, shape index: {}]
  %s6 = inlined_call_operand.vmem [shape: f32[8,128], index: 6, kind: output, shape index: {}]
  %s7 = sld [smem:[#allocation0]]
  $region34: #{_forward.1} parent=0
    _
  %s9 = ssub.s32 1, %s7
  %s10 = scalar_select 0, %s9, %s7
  // Predicated region
  $region2: #{_forward.1} parent=0 // pred_check
    _
  $region3: #{_forward.1} parent=0 // pred_check_branch
    %12 = sbr.rel (0) target = $region5
  $region4: #{_forward.1} parent=0 // pred_region
    _
  $region5: #{_forward.1} parent=0 // pred_fallthru
    _
  // Predicated region
  $region6: #{_forward.1} parent=0 // pred_check
    _
  $region7: #{_forward.1} parent=0 // pred_check_branch
    %14 = sbr.rel (0) target = $region9
  $region8: #{_forward.1} parent=0 // pred_region
    _
  $region9: #{_forward.1} parent=0 // pred_fallthru
    _
  // Predicated region
  $region10: #{_forward.1} parent=0 // pred_check
    _
  $region11: #{_forward.1} parent=0 // pred_check_branch
    %16 = sbr.rel (0) target = $region13
  $region12: #{_forward.1} parent=0 // pred_region
    _
  $region13: #{_forward.1} parent=0 // pred_fallthru
    _
  // Predicated region
  $region14: #{_forward.1} parent=0 // pred_check
    _
  $region15: #{_forward.1} parent=0 // pred_check_branch
    %18 = sbr.rel (0) target = $region17
  $region16: #{_forward.1} parent=0 // pred_region
    _
  $region17: #{_forward.1} parent=0 // pred_fallthru
    _
  // Predicated region
  $region18: #{_forward.1} parent=0 // pred_check
    _
  $region19: #{_forward.1} parent=0 // pred_check_branch
    %20 = sbr.rel (0) target = $region21
  $region20: #{_forward.1} parent=0 // pred_region
    _
  $region21: #{_forward.1} parent=0 // pred_fallthru
    _
  // Predicated region
  $region22: #{_forward.1} parent=0 // pred_check
    _
  $region23: #{_forward.1} parent=0 // pred_check_branch
    %22 = sbr.rel (0) target = $region25
  $region24: #{_forward.1} parent=0 // pred_region
    _
  $region25: #{_forward.1} parent=0 // pred_fallthru
    _
  %v24 = vld [vmem:[%s0] sm:$0xff]
  %v25 = vld [vmem:[%s0 + $0x8] sm:$0xff]
  %v26 = vld [vmem:[%s0 + $0x10] sm:$0xff]
  %v27 = vld [vmem:[%s0 + $0x18] sm:$0xff]
  %v28 = vld [vmem:[%s0 + $0x20] sm:$0xff]
  %v29 = vld [vmem:[%s0 + $0x28] sm:$0xff]
  %v30 = vld [vmem:[%s0 + $0x30] sm:$0xff]
  %v31 = vld [vmem:[%s0 + $0x38] sm:$0xff]
  %v32 = vld [vmem:[%s0 + $0x40] sm:$0xff]
  %v33 = vld [vmem:[%s0 + $0x48] sm:$0xff]
  %v34 = vld [vmem:[%s0 + $0x50] sm:$0xff]
  %v35 = vld [vmem:[%s0 + $0x58] sm:$0xff]
  %v36 = vld [vmem:[%s0 + $0x60] sm:$0xff]
  %v37 = vld [vmem:[%s0 + $0x68] sm:$0xff]
  %v38 = vld [vmem:[%s0 + $0x70] sm:$0xff]
  %v39 = vld [vmem:[%s0 + $0x78] sm:$0xff]
  %v40 = vld [vmem:[%s1] sm:$0xff]
  %v41 = vld [vmem:[%s1 + $0x8] sm:$0xff]
  %v42 = vld [vmem:[%s1 + $0x10] sm:$0xff]
  %v43 = vld [vmem:[%s1 + $0x18] sm:$0xff]
  %v44 = vld [vmem:[%s1 + $0x20] sm:$0xff]
  %v45 = vld [vmem:[%s1 + $0x28] sm:$0xff]
  %v46 = vld [vmem:[%s1 + $0x30] sm:$0xff]
  %v47 = vld [vmem:[%s1 + $0x38] sm:$0xff]
  %v48 = vld [vmem:[%s1 + $0x40] sm:$0xff]
  %v49 = vld [vmem:[%s1 + $0x48] sm:$0xff]
  %v50 = vld [vmem:[%s1 + $0x50] sm:$0xff]
  %v51 = vld [vmem:[%s1 + $0x58] sm:$0xff]
  %v52 = vld [vmem:[%s1 + $0x60] sm:$0xff]
  %v53 = vld [vmem:[%s1 + $0x68] sm:$0xff]
  %v54 = vld [vmem:[%s1 + $0x70] sm:$0xff]
  %v55 = vld [vmem:[%s1 + $0x78] sm:$0xff]
  %v56 = vld [vmem:[%s1 + $0x80] sm:$0xff]
  %v57 = vld [vmem:[%s1 + $0x88] sm:$0xff]
  %v58 = vld [vmem:[%s1 + $0x90] sm:$0xff]
  %v59 = vld [vmem:[%s1 + $0x98] sm:$0xff]
  %v60 = vld [vmem:[%s1 + $0xa0] sm:$0x11]
  %v61 = vld [vmem:[%s2] sm:$0x3]
  %v63 = vperm.slane %v61, 0
  %v64 = vperm.slane %v61, 1
  %v83 = vunpack.c.l.b16 %v24
  %v84 = vunpack.c.h.b16 %v24
  %v85 = vunpack.c.l.b16 %v25
  %v86 = vunpack.c.h.b16 %v25
  %v87 = vunpack.c.l.b16 %v26
  %v88 = vunpack.c.h.b16 %v26
  %v89 = vunpack.c.l.b16 %v27
  %v90 = vunpack.c.h.b16 %v27
  %v91 = vunpack.c.l.b16 %v28
  %v92 = vunpack.c.h.b16 %v28
  %v93 = vunpack.c.l.b16 %v29
  %v94 = vunpack.c.h.b16 %v29
  %v95 = vunpack.c.l.b16 %v30
  %v96 = vunpack.c.h.b16 %v30
  %v97 = vunpack.c.l.b16 %v31
  %v98 = vunpack.c.h.b16 %v31
  %v99 = vunpack.c.l.b16 %v32
  %v100 = vunpack.c.h.b16 %v32
  %v101 = vunpack.c.l.b16 %v33
  %v102 = vunpack.c.h.b16 %v33
  %v103 = vunpack.c.l.b16 %v34
  %v104 = vunpack.c.h.b16 %v34
  %v105 = vunpack.c.l.b16 %v35
  %v106 = vunpack.c.h.b16 %v35
  %v107 = vunpack.c.l.b16 %v36
  %v108 = vunpack.c.h.b16 %v36
  %v109 = vunpack.c.l.b16 %v37
  %v110 = vunpack.c.h.b16 %v37
  %v111 = vunpack.c.l.b16 %v38
  %v112 = vunpack.c.h.b16 %v38
  %v113 = vunpack.c.l.b16 %v39
  %v114 = vunpack.c.h.b16 %v39
  %v115 = vpack.c.b16 %v85, %v83
  %v116 = vpack.c.b16 %v86, %v84
  %v117 = vpack.c.b16 %v89, %v87
  %v118 = vpack.c.b16 %v90, %v88
  %v119 = vpack.c.b16 %v93, %v91
  %v120 = vpack.c.b16 %v94, %v92
  %v121 = vpack.c.b16 %v97, %v95
  %v122 = vpack.c.b16 %v98, %v96
  %v123 = vpack.c.b16 %v101, %v99
  %v124 = vpack.c.b16 %v102, %v100
  %v125 = vpack.c.b16 %v105, %v103
  %v126 = vpack.c.b16 %v106, %v104
  %v127 = vpack.c.b16 %v109, %v107
  %v128 = vpack.c.b16 %v110, %v108
  %v129 = vpack.c.b16 %v113, %v111
  %v130 = vpack.c.b16 %v114, %v112
  %v160 = vunpack.c.l.b16 %v40
  %v161 = vunpack.c.h.b16 %v40
  %v162 = vunpack.c.l.b16 %v41
  %v163 = vunpack.c.h.b16 %v41
  %v164 = vunpack.c.l.b16 %v42
  %v165 = vunpack.c.h.b16 %v42
  %v166 = vunpack.c.l.b16 %v43
  %v167 = vunpack.c.h.b16 %v43
  %v168 = vunpack.c.l.b16 %v44
  %v169 = vunpack.c.h.b16 %v44
  %v170 = vunpack.c.l.b16 %v45
  %v171 = vunpack.c.h.b16 %v45
  %v172 = vunpack.c.l.b16 %v46
  %v173 = vunpack.c.h.b16 %v46
  %v174 = vunpack.c.l.b16 %v47
  %v175 = vunpack.c.h.b16 %v47
  %v176 = vunpack.c.l.b16 %v48
  %v177 = vunpack.c.h.b16 %v48
  %v178 = vunpack.c.l.b16 %v49
  %v179 = vunpack.c.h.b16 %v49
  %v180 = vunpack.c.l.b16 %v50
  %v181 = vunpack.c.h.b16 %v50
  %v182 = vunpack.c.l.b16 %v51
  %v183 = vunpack.c.h.b16 %v51
  %v184 = vunpack.c.l.b16 %v52
  %v185 = vunpack.c.h.b16 %v52
  %v186 = vunpack.c.l.b16 %v53
  %v187 = vunpack.c.h.b16 %v53
  %v188 = vunpack.c.l.b16 %v54
  %v189 = vunpack.c.h.b16 %v54
  %v190 = vunpack.c.l.b16 %v55
  %v191 = vunpack.c.h.b16 %v55
  %v192 = vunpack.c.l.b16 %v56
  %v193 = vunpack.c.h.b16 %v56
  %v194 = vunpack.c.l.b16 %v57
  %v195 = vunpack.c.h.b16 %v57
  %v196 = vunpack.c.l.b16 %v58
  %v197 = vunpack.c.h.b16 %v58
  %v198 = vunpack.c.l.b16 %v59
  %v199 = vunpack.c.h.b16 %v59
  %v200 = vunpack.c.l.b16 %v60
  %v201 = vunpack.c.h.b16 %v60
  %v202 = vpack.c.b16 %v162, %v160
  %v203 = vpack.c.b16 %v163, %v161
  %v204 = vpack.c.b16 %v166, %v164
  %v205 = vpack.c.b16 %v167, %v165
  %v206 = vpack.c.b16 %v170, %v168
  %v207 = vpack.c.b16 %v171, %v169
  %v208 = vpack.c.b16 %v174, %v172
  %v209 = vpack.c.b16 %v175, %v173
  %v210 = vpack.c.b16 %v178, %v176
  %v211 = vpack.c.b16 %v179, %v177
  %v212 = vpack.c.b16 %v182, %v180
  %v213 = vpack.c.b16 %v183, %v181
  %v214 = vpack.c.b16 %v186, %v184
  %v215 = vpack.c.b16 %v187, %v185
  %v216 = vpack.c.b16 %v190, %v188
  %v217 = vpack.c.b16 %v191, %v189
  %v218 = vpack.c.b16 %v194, %v192
  %v219 = vpack.c.b16 %v195, %v193
  %v220 = vpack.c.b16 %v198, %v196
  %v221 = vpack.c.b16 %v199, %v197
  %v222 = vpack.c.b16 %v200, %v200
  %v223 = vpack.c.b16 %v201, %v201
  %vm244 = vcmask 277504
  %v246 = vsel %vm244, %v116, 0
  %v249 = vsel %vm244, %v118, 0
  %v252 = vsel %vm244, %v120, 0
  %v255 = vsel %vm244, %v122, 0
  %v258 = vsel %vm244, %v124, 0
  %v261 = vsel %vm244, %v126, 0
  %v264 = vsel %vm244, %v128, 0
  %v267 = vsel %vm244, %v130, 0
  %vm269 = vcmask 1040384
  %v271 = vsel %vm269, %v222, 0
  %v274 = vsel %vm269, %v223, 0
  %276 = vmatpush.bf16.msra.mxu0 %v216
  %277 = vmatpush.bf16.msra.mxu0 %v214
  %278 = vmatpush.bf16.msra.mxu0 %v212
  %279 = vmatpush.bf16.msra.mxu0 %v210
  %280 = vmatpush.bf16.msra.mxu0 %v208
  %281 = vmatpush.bf16.msra.mxu0 %v206
  %282 = vmatpush.bf16.msra.mxu0 %v204
  %283 = vmatpush.bf16.msra.mxu0 %v202
  %284 = vmatmul.bf16.gmra.mxu0 %v115
  %v285 = vpop.f32.mrf.mxu0
  %v286 = vadd.f32 %v63, %v285
  %v287 = vpop.f32.mrf.mxu0
  %v288 = vadd.f32 %v63, %v287
  %289 = vmatmul.bf16.gmra.mxu0 %v117
  %v290 = vpop.f32.mrf.mxu0
  %v291 = vadd.f32 %v63, %v290
  %v292 = vpop.f32.mrf.mxu0
  %v293 = vadd.f32 %v63, %v292
  %294 = vmatmul.bf16.gmra.mxu0 %v119
  %v295 = vpop.f32.mrf.mxu0
  %v296 = vadd.f32 %v63, %v295
  %v297 = vpop.f32.mrf.mxu0
  %v298 = vadd.f32 %v63, %v297
  %299 = vmatmul.bf16.gmra.mxu0 %v121
  %v300 = vpop.f32.mrf.mxu0
  %v301 = vadd.f32 %v63, %v300
  %v302 = vpop.f32.mrf.mxu0
  %v303 = vadd.f32 %v63, %v302
  %304 = vmatmul.bf16.gmra.mxu0 %v123
  %v305 = vpop.f32.mrf.mxu0
  %v306 = vadd.f32 %v63, %v305
  %v307 = vpop.f32.mrf.mxu0
  %v308 = vadd.f32 %v63, %v307
  %309 = vmatmul.bf16.gmra.mxu0 %v125
  %v310 = vpop.f32.mrf.mxu0
  %v311 = vadd.f32 %v63, %v310
  %v312 = vpop.f32.mrf.mxu0
  %v313 = vadd.f32 %v63, %v312
  %314 = vmatmul.bf16.gmra.mxu0 %v127
  %v315 = vpop.f32.mrf.mxu0
  %v316 = vadd.f32 %v63, %v315
  %v317 = vpop.f32.mrf.mxu0
  %v318 = vadd.f32 %v63, %v317
  %319 = vmatmul.bf16.gmra.mxu0 %v129
  %v320 = vpop.f32.mrf.mxu0
  %v321 = vadd.f32 %v63, %v320
  %v322 = vpop.f32.mrf.mxu0
  %v323 = vadd.f32 %v63, %v322
  %324 = vdwg.mxu0
  %325 = vmatpush.bf16.msra.mxu0 0
  %326 = vmatpush.bf16.msra.mxu0 0
  %327 = vmatpush.bf16.msra.mxu0 0
  %328 = vmatpush.bf16.msra.mxu0 0
  %329 = vmatpush.bf16.msra.mxu0 0
  %330 = vmatpush.bf16.msra.mxu0 %v271
  %331 = vmatpush.bf16.msra.mxu0 %v220
  %332 = vmatpush.bf16.msra.mxu0 %v218
  %333 = vmatmul.bf16.gmra.mxu0 %v246
  %v334 = vpop.f32.mrf.mxu0
  %v335 = vadd.f32 %v286, %v334
  %v336 = vpop.f32.mrf.mxu0
  %v337 = vadd.f32 %v288, %v336
  %338 = vmatmul.bf16.gmra.mxu0 %v249
  %v339 = vpop.f32.mrf.mxu0
  %v340 = vadd.f32 %v291, %v339
  %v341 = vpop.f32.mrf.mxu0
  %v342 = vadd.f32 %v293, %v341
  %343 = vmatmul.bf16.gmra.mxu0 %v252
  %v344 = vpop.f32.mrf.mxu0
  %v345 = vadd.f32 %v296, %v344
  %v346 = vpop.f32.mrf.mxu0
  %v347 = vadd.f32 %v298, %v346
  %348 = vmatmul.bf16.gmra.mxu0 %v255
  %v349 = vpop.f32.mrf.mxu0
  %v350 = vadd.f32 %v301, %v349
  %v351 = vpop.f32.mrf.mxu0
  %v352 = vadd.f32 %v303, %v351
  %353 = vmatmul.bf16.gmra.mxu0 %v258
  %v354 = vpop.f32.mrf.mxu0
  %v355 = vadd.f32 %v306, %v354
  %v356 = vpop.f32.mrf.mxu0
  %v357 = vadd.f32 %v308, %v356
  %358 = vmatmul.bf16.gmra.mxu0 %v261
  %v359 = vpop.f32.mrf.mxu0
  %v360 = vadd.f32 %v311, %v359
  %v361 = vpop.f32.mrf.mxu0
  %v362 = vadd.f32 %v313, %v361
  %363 = vmatmul.bf16.gmra.mxu0 %v264
  %v364 = vpop.f32.mrf.mxu0
  %v365 = vadd.f32 %v316, %v364
  %v366 = vpop.f32.mrf.mxu0
  %v367 = vadd.f32 %v318, %v366
  %368 = vmatmul.bf16.gmra.mxu0 %v267
  %v369 = vpop.f32.mrf.mxu0
  %v370 = vadd.f32 %v321, %v369
  %v371 = vpop.f32.mrf.mxu0
  %v372 = vadd.f32 %v323, %v371
  %373 = vdwg.mxu0
  %374 = vmatpush.bf16.msra.mxu0 %v217
  %375 = vmatpush.bf16.msra.mxu0 %v215
  %376 = vmatpush.bf16.msra.mxu0 %v213
  %377 = vmatpush.bf16.msra.mxu0 %v211
  %378 = vmatpush.bf16.msra.mxu0 %v209
  %379 = vmatpush.bf16.msra.mxu0 %v207
  %380 = vmatpush.bf16.msra.mxu0 %v205
  %381 = vmatpush.bf16.msra.mxu0 %v203
  %382 = vmatmul.bf16.gmra.mxu0 %v115
  %v383 = vpop.f32.mrf.mxu0
  %v384 = vadd.f32 %v64, %v383
  %v385 = vpop.f32.mrf.mxu0
  %v386 = vadd.f32 %v64, %v385
  %387 = vmatmul.bf16.gmra.mxu0 %v117
  %v388 = vpop.f32.mrf.mxu0
  %v389 = vadd.f32 %v64, %v388
  %v390 = vpop.f32.mrf.mxu0
  %v391 = vadd.f32 %v64, %v390
  %392 = vmatmul.bf16.gmra.mxu0 %v119
  %v393 = vpop.f32.mrf.mxu0
  %v394 = vadd.f32 %v64, %v393
  %v395 = vpop.f32.mrf.mxu0
  %v396 = vadd.f32 %v64, %v395
  %397 = vmatmul.bf16.gmra.mxu0 %v121
  %v398 = vpop.f32.mrf.mxu0
  %v399 = vadd.f32 %v64, %v398
  %v400 = vpop.f32.mrf.mxu0
  %v401 = vadd.f32 %v64, %v400
  %402 = vmatmul.bf16.gmra.mxu0 %v123
  %v403 = vpop.f32.mrf.mxu0
  %v404 = vadd.f32 %v64, %v403
  %v405 = vpop.f32.mrf.mxu0
  %v406 = vadd.f32 %v64, %v405
  %407 = vmatmul.bf16.gmra.mxu0 %v125
  %v408 = vpop.f32.mrf.mxu0
  %v409 = vadd.f32 %v64, %v408
  %v410 = vpop.f32.mrf.mxu0
  %v411 = vadd.f32 %v64, %v410
  %412 = vmatmul.bf16.gmra.mxu0 %v127
  %v413 = vpop.f32.mrf.mxu0
  %v414 = vadd.f32 %v64, %v413
  %v415 = vpop.f32.mrf.mxu0
  %v416 = vadd.f32 %v64, %v415
  %417 = vmatmul.bf16.gmra.mxu0 %v129
  %v418 = vpop.f32.mrf.mxu0
  %v419 = vadd.f32 %v64, %v418
  %v420 = vpop.f32.mrf.mxu0
  %v421 = vadd.f32 %v64, %v420
  %422 = vdwg.mxu0
  %423 = vmatpush.bf16.msra.mxu0 0
  %424 = vmatpush.bf16.msra.mxu0 0
  %425 = vmatpush.bf16.msra.mxu0 0
  %426 = vmatpush.bf16.msra.mxu0 0
  %427 = vmatpush.bf16.msra.mxu0 0
  %428 = vmatpush.bf16.msra.mxu0 %v274
  %429 = vmatpush.bf16.msra.mxu0 %v221
  %430 = vmatpush.bf16.msra.mxu0 %v219
  %431 = vmatmul.bf16.gmra.mxu0 %v246
  %v432 = vpop.f32.mrf.mxu0
  %v433 = vadd.f32 %v384, %v432
  %v434 = vpop.f32.mrf.mxu0
  %v435 = vadd.f32 %v386, %v434
  %436 = vmatmul.bf16.gmra.mxu0 %v249
  %v437 = vpop.f32.mrf.mxu0
  %v438 = vadd.f32 %v389, %v437
  %v439 = vpop.f32.mrf.mxu0
  %v440 = vadd.f32 %v391, %v439
  %441 = vmatmul.bf16.gmra.mxu0 %v252
  %v442 = vpop.f32.mrf.mxu0
  %v443 = vadd.f32 %v394, %v442
  %v444 = vpop.f32.mrf.mxu0
  %v445 = vadd.f32 %v396, %v444
  %446 = vmatmul.bf16.gmra.mxu0 %v255
  %v447 = vpop.f32.mrf.mxu0
  %v448 = vadd.f32 %v399, %v447
  %v449 = vpop.f32.mrf.mxu0
  %v450 = vadd.f32 %v401, %v449
  %451 = vmatmul.bf16.gmra.mxu0 %v258
  %v452 = vpop.f32.mrf.mxu0
  %v453 = vadd.f32 %v404, %v452
  %v454 = vpop.f32.mrf.mxu0
  %v455 = vadd.f32 %v406, %v454
  %456 = vmatmul.bf16.gmra.mxu0 %v261
  %v457 = vpop.f32.mrf.mxu0
  %v458 = vadd.f32 %v409, %v457
  %v459 = vpop.f32.mrf.mxu0
  %v460 = vadd.f32 %v411, %v459
  %461 = vmatmul.bf16.gmra.mxu0 %v264
  %v462 = vpop.f32.mrf.mxu0
  %v463 = vadd.f32 %v414, %v462
  %v464 = vpop.f32.mrf.mxu0
  %v465 = vadd.f32 %v416, %v464
  %466 = vmatmul.bf16.gmra.mxu0 %v267
  %v467 = vpop.f32.mrf.mxu0
  %v468 = vadd.f32 %v419, %v467
  %v469 = vpop.f32.mrf.mxu0
  %v470 = vadd.f32 %v421, %v469
  %471 = vdwg.mxu0
  %v472 = vmax.f32 %v335, 0.0
  %v473 = vmax.f32 %v433, 0.0
  %v474 = vmax.f32 %v337, 0.0
  %v475 = vmax.f32 %v435, 0.0
  %v476 = vmax.f32 %v340, 0.0
  %v477 = vmax.f32 %v438, 0.0
  %v478 = vmax.f32 %v342, 0.0
  %v479 = vmax.f32 %v440, 0.0
  %v480 = vmax.f32 %v345, 0.0
  %v481 = vmax.f32 %v443, 0.0
  %v482 = vmax.f32 %v347, 0.0
  %v483 = vmax.f32 %v445, 0.0
  %v484 = vmax.f32 %v350, 0.0
  %v485 = vmax.f32 %v448, 0.0
  %v486 = vmax.f32 %v352, 0.0
  %v487 = vmax.f32 %v450, 0.0
  %v488 = vmax.f32 %v355, 0.0
  %v489 = vmax.f32 %v453, 0.0
  %v490 = vmax.f32 %v357, 0.0
  %v491 = vmax.f32 %v455, 0.0
  %v492 = vmax.f32 %v360, 0.0
  %v493 = vmax.f32 %v458, 0.0
  %v494 = vmax.f32 %v362, 0.0
  %v495 = vmax.f32 %v460, 0.0
  %v496 = vmax.f32 %v365, 0.0
  %v497 = vmax.f32 %v463, 0.0
  %v498 = vmax.f32 %v367, 0.0
  %v499 = vmax.f32 %v465, 0.0
  %v500 = vmax.f32 %v370, 0.0
  %v501 = vmax.f32 %v468, 0.0
  %v502 = vmax.f32 %v372, 0.0
  %v503 = vmax.f32 %v470, 0.0
  %v504 = vpack.c.bf16 %v474, %v472
  %v505 = vpack.c.bf16 %v475, %v473
  %v506 = vpack.c.bf16 %v478, %v476
  %v507 = vpack.c.bf16 %v479, %v477
  %v508 = vpack.c.bf16 %v482, %v480
  %v509 = vpack.c.bf16 %v483, %v481
  %v510 = vpack.c.bf16 %v486, %v484
  %v511 = vpack.c.bf16 %v487, %v485
  %v512 = vpack.c.bf16 %v490, %v488
  %v513 = vpack.c.bf16 %v491, %v489
  %v514 = vpack.c.bf16 %v494, %v492
  %v515 = vpack.c.bf16 %v495, %v493
  %v516 = vpack.c.bf16 %v498, %v496
  %v517 = vpack.c.bf16 %v499, %v497
  %v518 = vpack.c.bf16 %v502, %v500
  %v519 = vpack.c.bf16 %v503, %v501
  %v520 = vld [vmem:[%s3] sm:$0xf]
  %521 = vmatpush.bf16.msra.mxu0 %v518
  %522 = vmatpush.bf16.msra.mxu0 %v516
  %523 = vmatpush.bf16.msra.mxu0 %v514
  %524 = vmatpush.bf16.msra.mxu0 %v512
  %525 = vmatpush.bf16.msra.mxu0 %v510
  %526 = vmatpush.bf16.msra.mxu0 %v508
  %527 = vmatpush.bf16.msra.mxu0 %v506
  %528 = vmatpush.bf16.msra.mxu0 %v504
  %529 = vmatmul.bf16.gmra.mxu0 %v520
  %v530 = vpop.f32.mrf.mxu0
  %v531 = vadd.f32 0.0, %v530
  %v532 = vpop.f32.mrf.mxu0
  %533 = vdwg.mxu0
  %534 = vmatpush.bf16.msra.mxu0 %v519
  %535 = vmatpush.bf16.msra.mxu0 %v517
  %536 = vmatpush.bf16.msra.mxu0 %v515
  %537 = vmatpush.bf16.msra.mxu0 %v513
  %538 = vmatpush.bf16.msra.mxu0 %v511
  %539 = vmatpush.bf16.msra.mxu0 %v509
  %540 = vmatpush.bf16.msra.mxu0 %v507
  %541 = vmatpush.bf16.msra.mxu0 %v505
  %542 = vmatmul.bf16.gmra.mxu0 %v520
  %v543 = vpop.f32.mrf.mxu0
  %v544 = vadd.f32 0.0, %v543
  %v545 = vpop.f32.mrf.mxu0
  %546 = vdwg.mxu0
  %v547 = vld [vmem:[%s4] sm:$0xff]
  %v548 = vld [vmem:[%s4 + $0x8] sm:$0xff]
  %v549 = vld [vmem:[%s4 + $0x10] sm:$0xff]
  %v550 = vld [vmem:[%s4 + $0x18] sm:$0xff]
  %v551 = vld [vmem:[%s4 + $0x20] sm:$0xff]
  %v552 = vld [vmem:[%s4 + $0x28] sm:$0xff]
  %v553 = vld [vmem:[%s4 + $0x30] sm:$0xff]
  %v554 = vld [vmem:[%s4 + $0x38] sm:$0xff]
  %v555 = vld [vmem:[%s4 + $0x40] sm:$0xff]
  %v556 = vld [vmem:[%s4 + $0x48] sm:$0xff]
  %v557 = vld [vmem:[%s4 + $0x50] sm:$0xff]
  %v558 = vld [vmem:[%s4 + $0x58] sm:$0xff]
  %v559 = vld [vmem:[%s4 + $0x60] sm:$0xff]
  %v560 = vld [vmem:[%s4 + $0x68] sm:$0xff]
  %v561 = vld [vmem:[%s4 + $0x70] sm:$0xff]
  %v562 = vld [vmem:[%s4 + $0x78] sm:$0xff]
  %v563 = vld [vmem:[%s4 + $0x80] sm:$0xff]
  %v564 = vld [vmem:[%s4 + $0x88] sm:$0xff]
  %v565 = vld [vmem:[%s4 + $0x90] sm:$0xff]
  %v566 = vld [vmem:[%s4 + $0x98] sm:$0xff]
  %v567 = vld [vmem:[%s4 + $0xa0] sm:$0xff]
  %v568 = vld [vmem:[%s4 + $0xa8] sm:$0xff]
  %v569 = vld [vmem:[%s4 + $0xb0] sm:$0xff]
  %v570 = vld [vmem:[%s4 + $0xb8] sm:$0xff]
  %v571 = vld [vmem:[%s4 + $0xc0] sm:$0xff]
  %v572 = vld [vmem:[%s4 + $0xc8] sm:$0xff]
  %v573 = vld [vmem:[%s4 + $0xd0] sm:$0xff]
  %v574 = vld [vmem:[%s4 + $0xd8] sm:$0xff]
  %v575 = vld [vmem:[%s4 + $0xe0] sm:$0xff]
  %v576 = vld [vmem:[%s4 + $0xe8] sm:$0xff]
  %v577 = vld [vmem:[%s4 + $0xf0] sm:$0xff]
  %v578 = vld [vmem:[%s4 + $0xf8] sm:$0xff]
  %v579 = vld [vmem:[%s5] sm:$0x1]
  %v581 = vperm.slane %v579, 0
  %583 = vmatpush.msra.mxu0 %v562
  %584 = vmatpush.msra.mxu0 %v561
  %585 = vmatpush.msra.mxu0 %v560
  %586 = vmatpush.msra.mxu0 %v559
  %587 = vmatpush.msra.mxu0 %v558
  %588 = vmatpush.msra.mxu0 %v557
  %589 = vmatpush.msra.mxu0 %v556
  %590 = vmatpush.msra.mxu0 %v555
  %591 = vmatpush.msra.mxu0 %v554
  %592 = vmatpush.msra.mxu0 %v553
  %593 = vmatpush.msra.mxu0 %v552
  %594 = vmatpush.msra.mxu0 %v551
  %595 = vmatpush.msra.mxu0 %v550
  %596 = vmatpush.msra.mxu0 %v549
  %597 = vmatpush.msra.mxu0 %v548
  %598 = vmatpush.msra.mxu0 %v547
  %599 = vmatmul.f32.gmra.mxu0 %v531
  %v600 = vpop.f32.mrf.mxu0
  %v601 = vadd.f32 %v581, %v600
  %602 = vdwg.mxu0
  %603 = vmatpush.msra.mxu0 %v578
  %604 = vmatpush.msra.mxu0 %v577
  %605 = vmatpush.msra.mxu0 %v576
  %606 = vmatpush.msra.mxu0 %v575
  %607 = vmatpush.msra.mxu0 %v574
  %608 = vmatpush.msra.mxu0 %v573
  %609 = vmatpush.msra.mxu0 %v572
  %610 = vmatpush.msra.mxu0 %v571
  %611 = vmatpush.msra.mxu0 %v570
  %612 = vmatpush.msra.mxu0 %v569
  %613 = vmatpush.msra.mxu0 %v568
  %614 = vmatpush.msra.mxu0 %v567
  %615 = vmatpush.msra.mxu0 %v566
  %616 = vmatpush.msra.mxu0 %v565
  %617 = vmatpush.msra.mxu0 %v564
  %618 = vmatpush.msra.mxu0 %v563
  %619 = vmatmul.f32.gmra.mxu0 %v544
  %v620 = vpop.f32.mrf.mxu0
  %v621 = vadd.f32 %v601, %v620
  %622 = vdwg.mxu0
  %623 = vst [vmem:[%s6] sm:$0xff] %v621
  // Predicated region
  $region26: #{_forward.1} parent=0 // pred_check
    _
  $region27: #{_forward.1} parent=0 // pred_check_branch
    %625 = sbr.rel (0) target = $region29
  $region28: #{_forward.1} parent=0 // pred_region
    _
  $region29: #{_forward.1} parent=0 // pred_fallthru
    _
  // Predicated region
  $region30: #{_forward.1} parent=0 // pred_check
    _
  $region31: #{_forward.1} parent=0 // pred_check_branch
    %627 = sbr.rel (0) target = $region33
  $region32: #{_forward.1} parent=0 // pred_region
    _
  $region33: #{_forward.1} parent=0 // pred_fallthru
    _

</llo_original>
